<compile_context>
chip_gen: v6e
topology: v6e:2x2x1
jax: 0.10.0
libtpu: 0.0.40
codegen_flags: <defaults>
</compile_context>

<pallas_src>
import jax
import jax.numpy as jnp
from jax.experimental import pallas as pl
from jax.experimental.pallas import tpu as pltpu


def _conv_stats_kernel(x_ref, w_ref, b_ref, y_ref, s_ref, ss_ref):
    """One (batch, time-tile) cell: fused-tap causal conv + BN partial stats.

    x_ref : (1, K*C_in, tile_t)  stacked shifted input taps
    w_ref : (C_out, K*C_in)      fused conv weight (tap-major columns)
    b_ref : (C_out, 1)           conv bias (f32)
    y_ref : (1, C_out, tile_t)   pre-BN conv output (f32)
    s_ref : (1, 1, C_out, 1)     per-tile per-channel sum(y)
    ss_ref: (1, 1, C_out, 1)     per-tile per-channel sum(y*y)
    """
    x = x_ref[0]                                   # (K*C_in, tile_t)
    w = w_ref[...]                                 # (C_out, K*C_in)
    # All K taps in a single MXU push; f32 accumulation.
    y = jnp.dot(w, x, preferred_element_type=jnp.float32)
    y = y + b_ref[...]                             # bias broadcast over lanes
    y_ref[0] = y
    # One-pass BN statistics (sum, sum of squares) — per-channel scalars only.
    s_ref[0, 0] = jnp.sum(y, axis=1, keepdims=True)
    ss_ref[0, 0] = jnp.sum(y * y, axis=1, keepdims=True)


def _bn_relu_kernel(y_ref, scale_ref, shift_ref, o_ref):
    """Normalize + affine + ReLU:  out = max(y * scale + shift, 0)."""
    o_ref[0] = jnp.maximum(
        y_ref[0] * scale_ref[...] + shift_ref[...], 0.0
    ).astype(o_ref.dtype)


def causal_dilated_conv_block(x, weight, bias, gamma, beta, *,
                              dilation=1, eps=1e-5, max_tile_t=256):
    """x: (B, C_in, T); weight: (C_out, C_in, K); bias/gamma/beta: (C_out,).

    Matches CausalDilatedConvBlock.forward with BatchNorm1d in training mode
    (batch statistics over (B, T), biased variance).
    """
    B, C_in, T = x.shape
    C_out, _, K = weight.shape
    pad = (K - 1) * dilation
    KC = K * C_in

    # ---- lane-aligned time tiling (output/store stays 128-lane dense) ----
    lane = 128
    tile_t = min(max_tile_t, pl.cdiv(T, lane) * lane)
    T_pad = pl.cdiv(T, tile_t) * tile_t
    NT = T_pad // tile_t

    # ---- wrapper-side glue (cheap, plain JAX) ----
    # im2col-style stacked taps: row j*C_in + ci  <->  tap j, input channel ci.
    xp = jnp.pad(x, ((0, 0), (0, 0), (pad, 0)))                 # left pad only
    x_stk = jnp.concatenate(
        [xp[:, :, j * dilation:j * dilation + T] for j in range(K)], axis=1)
    x_stk = jnp.pad(x_stk, ((0, 0), (0, 0), (0, T_pad - T)))    # (B, KC, T_pad)
    w_fused = jnp.transpose(weight, (0, 2, 1)).reshape(C_out, KC).astype(x.dtype)
    b_col = bias.astype(jnp.float32).reshape(C_out, 1)

    itemsize = jnp.dtype(x.dtype).itemsize
    conv_cost = pl.CostEstimate(
        flops=2 * B * C_out * KC * T_pad + 3 * B * C_out * T_pad,
        transcendentals=0,
        bytes_accessed=(B * KC * T_pad * itemsize + C_out * KC * itemsize
                        + 4 * (B * C_out * T_pad + 2 * B * NT * C_out + C_out)),
    )

    # ---- pass 1: conv + per-tile BN partials ----
    y, part_sum, part_sq = pl.pallas_call(
        _conv_stats_kernel,
        out_shape=(
            jax.ShapeDtypeStruct((B, C_out, T_pad), jnp.float32),
            jax.ShapeDtypeStruct((B, NT, C_out, 1), jnp.float32),
            jax.ShapeDtypeStruct((B, NT, C_out, 1), jnp.float32),
        ),
        grid=(B, NT),
        in_specs=[
            pl.BlockSpec((1, KC, tile_t), lambda b, t: (b, 0, t)),
            pl.BlockSpec((C_out, KC), lambda b, t: (0, 0)),
            pl.BlockSpec((C_out, 1), lambda b, t: (0, 0)),
        ],
        out_specs=(
            pl.BlockSpec((1, C_out, tile_t), lambda b, t: (b, 0, t)),
            pl.BlockSpec((1, 1, C_out, 1), lambda b, t: (b, t, 0, 0)),
            pl.BlockSpec((1, 1, C_out, 1), lambda b, t: (b, t, 0, 0)),
        ),
        compiler_params=pltpu.CompilerParams(
            dimension_semantics=("parallel", "parallel")),
        cost_estimate=conv_cost,
    )(x_stk, w_fused, b_col)

    # ---- glue: reduce tile partials -> mean/var -> folded BN scale/shift ----
    n_valid = B * T
    n_tail = B * (T_pad - T)          # zero-padded columns: conv output == bias
    bias_f = bias.astype(jnp.float32)
    sum_y = jnp.sum(part_sum, axis=(0, 1))[:, 0] - n_tail * bias_f
    sum_y2 = jnp.sum(part_sq, axis=(0, 1))[:, 0] - n_tail * bias_f * bias_f
    mean = sum_y / n_valid
    var = jnp.maximum(sum_y2 / n_valid - mean * mean, 0.0)      # biased var
    inv_std = jax.lax.rsqrt(var + eps)
    g = gamma.astype(jnp.float32)
    scale = (g * inv_std).reshape(C_out, 1)
    shift = (beta.astype(jnp.float32) - mean * g * inv_std).reshape(C_out, 1)

    bn_cost = pl.CostEstimate(
        flops=3 * B * C_out * T_pad,
        transcendentals=0,
        bytes_accessed=(4 * B * C_out * T_pad
                        + itemsize * B * C_out * T_pad + 8 * C_out),
    )

    # ---- pass 2: normalize + affine + ReLU ----
    out = pl.pallas_call(
        _bn_relu_kernel,
        out_shape=jax.ShapeDtypeStruct((B, C_out, T_pad), x.dtype),
        grid=(B, NT),
        in_specs=[
            pl.BlockSpec((1, C_out, tile_t), lambda b, t: (b, 0, t)),
            pl.BlockSpec((C_out, 1), lambda b, t: (0, 0)),
            pl.BlockSpec((C_out, 1), lambda b, t: (0, 0)),
        ],
        out_specs=pl.BlockSpec((1, C_out, tile_t), lambda b, t: (b, 0, t)),
        compiler_params=pltpu.CompilerParams(
            dimension_semantics=("parallel", "parallel")),
        cost_estimate=bn_cost,
    )(y, scale, shift)

    return out[:, :, :T]


def _reference(x, weight, bias, gamma, beta, dilation, eps):
    """Pure-JAX reference matching the PyTorch forward (training-mode BN)."""
    B, C_in, T = x.shape
    C_out, _, K = weight.shape
    pad = (K - 1) * dilation
    xp = jnp.pad(x, ((0, 0), (0, 0), (pad, 0)))
    out = jnp.zeros((B, C_out, T), jnp.float32)
    for j in range(K):
        out = out + jnp.einsum('oc,bct->bot', weight[:, :, j],
                               xp[:, :, j * dilation:j * dilation + T])
    out = out + bias[None, :, None]
    mean = out.mean(axis=(0, 2), keepdims=True)
    var = ((out - mean) ** 2).mean(axis=(0, 2), keepdims=True)
    out = (out - mean) / jnp.sqrt(var + eps)
    out = out * gamma[None, :, None] + beta[None, :, None]
    return jnp.maximum(out, 0.0)


if __name__ == "__main__":
    def run_case(B, C_in, C_out, T, K, dilation):
        eps = 1e-5
        key = jax.random.PRNGKey(0)
        kx, kw, kb, kg, kbe = jax.random.split(key, 5)
        x = jax.random.normal(kx, (B, C_in, T), dtype=jnp.float32)
        fan_in = C_in * K
        bound = 1.0 / float(fan_in) ** 0.5
        weight = jax.random.uniform(kw, (C_out, C_in, K), jnp.float32,
                                    -bound, bound)
        bias = jax.random.uniform(kb, (C_out,), jnp.float32, -bound, bound)
        # Non-trivial BN affine params to exercise the scale/shift path.
        gamma = jax.random.uniform(kg, (C_out,), jnp.float32, 0.5, 1.5)
        beta = jax.random.uniform(kbe, (C_out,), jnp.float32, -0.5, 0.5)

        out = causal_dilated_conv_block(x, weight, bias, gamma, beta,
                                        dilation=dilation, eps=eps)
        out = jax.block_until_ready(out)
        ref = _reference(x, weight, bias, gamma, beta, dilation, eps)
        assert out.shape == (B, C_out, T)
        err = float(jnp.max(jnp.abs(out - ref)))
        assert err < 1e-4, f"max abs err {err}"

    # Main config: multi-tile time grid (grid = (2, 2), 256-lane tiles).
    run_case(B=2, C_in=4, C_out=8, T=512, K=3, dilation=2)
    # Ragged config: T not a multiple of 128 — exercises the lane-padding and
    # the exact padded-tail correction of the BatchNorm statistics.
    run_case(B=3, C_in=5, C_out=6, T=100, K=4, dilation=3)

    print("KERNEL_OK")
</pallas_src>

<mosaic_0001>
module attributes {stable_mosaic.version = 11 : i64} {
  func.func @_conv_stats_kernel(%arg0: i32, %arg1: i32, %arg2: memref<1x12x256xf32, #tpu.memory_space<vmem>>, %arg3: memref<8x12xf32, #tpu.memory_space<vmem>>, %arg4: memref<8x1xf32, #tpu.memory_space<vmem>>, %arg5: memref<1x8x256xf32, #tpu.memory_space<vmem>>, %arg6: memref<1x1x8x1xf32, #tpu.memory_space<vmem>>, %arg7: memref<1x1x8x1xf32, #tpu.memory_space<vmem>>) attributes {dimension_semantics = [#tpu.dimension_semantics<parallel>, #tpu.dimension_semantics<parallel>], iteration_bounds = array<i64: 2, 2>, scalar_prefetch = 0 : i64, scratch_operands = 0 : i64, tpu.core_type = #tpu.core_type<tc>, window_params = [{transform_indices = @transform_0, window_bounds = array<i64: 1, 12, 256>}, {pipeline_mode = #tpu.pipeline_mode<synchronous>, transform_indices = @transform_1, window_bounds = array<i64: 8, 12>}, {pipeline_mode = #tpu.pipeline_mode<synchronous>, transform_indices = @transform_2, window_bounds = array<i64: 8, 1>}, {transform_indices = @transform_3, window_bounds = array<i64: 1, 8, 256>}, {transform_indices = @transform_4, window_bounds = array<i64: 1, 1, 8, 1>}, {transform_indices = @transform_5, window_bounds = array<i64: 1, 1, 8, 1>}]} {
    %c0 = arith.constant 0 : index
    %c0_0 = arith.constant 0 : index
    %c0_1 = arith.constant 0 : index
    %0 = vector.load %arg2[%c0, %c0_0, %c0_1] : memref<1x12x256xf32, #tpu.memory_space<vmem>>, vector<1x12x256xf32>
    %1 = vector.shape_cast %0 : vector<1x12x256xf32> to vector<12x256xf32>
    %c0_2 = arith.constant 0 : index
    %c0_3 = arith.constant 0 : index
    %2 = vector.load %arg3[%c0_2, %c0_3] : memref<8x12xf32, #tpu.memory_space<vmem>>, vector<8x12xf32>
    %cst = arith.constant dense<0.000000e+00> : vector<8x256xf32>
    %3 = tpu.matmul %2, %1, %cst {dimension_numbers = #tpu.dot_dimension_numbers<[1], [0], [0], [1], [0, 0, 1, 1], [], []>} : vector<8x12xf32>, vector<12x256xf32>, vector<8x256xf32> -> vector<8x256xf32>
    %c0_4 = arith.constant 0 : index
    %c0_5 = arith.constant 0 : index
    %4 = vector.load %arg4[%c0_4, %c0_5] : memref<8x1xf32, #tpu.memory_space<vmem>>, vector<8x1xf32>
    %5 = vector.broadcast %4 : vector<8x1xf32> to vector<8x256xf32>
    %6 = arith.addf %3, %5 : vector<8x256xf32>
    %c0_6 = arith.constant 0 : index
    %c0_7 = arith.constant 0 : index
    %c0_8 = arith.constant 0 : index
    %7 = vector.load %arg5[%c0_6, %c0_7, %c0_8] : memref<1x8x256xf32, #tpu.memory_space<vmem>>, vector<1x8x256xf32>
    %8 = vector.shape_cast %7 : vector<1x8x256xf32> to vector<8x256xf32>
    %9 = vector.shape_cast %6 : vector<8x256xf32> to vector<1x8x256xf32>
    tpu.vector_store %arg5[%c0_6, %c0_7, %c0_8], %9 {strides = array<i32>} : memref<1x8x256xf32, #tpu.memory_space<vmem>>, vector<1x8x256xf32>,
    %cst_9 = arith.constant dense<0.000000e+00> : vector<8xf32>
    %10 = vector.multi_reduction <add>, %6, %cst_9 [1] : vector<8x256xf32> to vector<8xf32>
    %11 = vector.shape_cast %10 : vector<8xf32> to vector<8x1xf32>
    %c0_10 = arith.constant 0 : index
    %c0_11 = arith.constant 0 : index
    %c0_12 = arith.constant 0 : index
    %c0_13 = arith.constant 0 : index
    %12 = vector.load %arg6[%c0_10, %c0_11, %c0_12, %c0_13] : memref<1x1x8x1xf32, #tpu.memory_space<vmem>>, vector<1x1x8x1xf32>
    %13 = vector.shape_cast %12 : vector<1x1x8x1xf32> to vector<8x1xf32>
    %14 = vector.shape_cast %11 : vector<8x1xf32> to vector<1x1x8x1xf32>
    tpu.vector_store %arg6[%c0_10, %c0_11, %c0_12, %c0_13], %14 {strides = array<i32>} : memref<1x1x8x1xf32, #tpu.memory_space<vmem>>, vector<1x1x8x1xf32>,
    %15 = arith.mulf %6, %6 : vector<8x256xf32>
    %cst_14 = arith.constant dense<0.000000e+00> : vector<8xf32>
    %16 = vector.multi_reduction <add>, %15, %cst_14 [1] : vector<8x256xf32> to vector<8xf32>
    %17 = vector.shape_cast %16 : vector<8xf32> to vector<8x1xf32>
    %c0_15 = arith.constant 0 : index
    %c0_16 = arith.constant 0 : index
    %c0_17 = arith.constant 0 : index
    %c0_18 = arith.constant 0 : index
    %18 = vector.load %arg7[%c0_15, %c0_16, %c0_17, %c0_18] : memref<1x1x8x1xf32, #tpu.memory_space<vmem>>, vector<1x1x8x1xf32>
    %19 = vector.shape_cast %18 : vector<1x1x8x1xf32> to vector<8x1xf32>
    %20 = vector.shape_cast %17 : vector<8x1xf32> to vector<1x1x8x1xf32>
    tpu.vector_store %arg7[%c0_15, %c0_16, %c0_17, %c0_18], %20 {strides = array<i32>} : memref<1x1x8x1xf32, #tpu.memory_space<vmem>>, vector<1x1x8x1xf32>,
    return
  }
  func.func @transform_0(%arg0: i32, %arg1: i32) -> (i32, i32, i32) {
    %c0_i32 = arith.constant 0 : i32
    %c0_i32_0 = arith.constant 0 : i32
    return %arg0, %c0_i32, %arg1 : i32, i32, i32
  }
  func.func @transform_1(%arg0: i32, %arg1: i32) -> (i32, i32) {
    %c0_i32 = arith.constant 0 : i32
    %c0_i32_0 = arith.constant 0 : i32
    %c0_i32_1 = arith.constant 0 : i32
    return %c0_i32, %c0_i32_0 : i32, i32
  }
  func.func @transform_2(%arg0: i32, %arg1: i32) -> (i32, i32) {
    %c0_i32 = arith.constant 0 : i32
    %c0_i32_0 = arith.constant 0 : i32
    %c0_i32_1 = arith.constant 0 : i32
    return %c0_i32, %c0_i32_0 : i32, i32
  }
  func.func @transform_3(%arg0: i32, %arg1: i32) -> (i32, i32, i32) {
    %c0_i32 = arith.constant 0 : i32
    %c0_i32_0 = arith.constant 0 : i32
    return %arg0, %c0_i32, %arg1 : i32, i32, i32
  }
  func.func @transform_4(%arg0: i32, %arg1: i32) -> (i32, i32, i32, i32) {
    %c0_i32 = arith.constant 0 : i32
    %c0_i32_0 = arith.constant 0 : i32
    %c0_i32_1 = arith.constant 0 : i32
    return %arg0, %arg1, %c0_i32, %c0_i32_0 : i32, i32, i32, i32
  }
  func.func @transform_5(%arg0: i32, %arg1: i32) -> (i32, i32, i32, i32) {
    %c0_i32 = arith.constant 0 : i32
    %c0_i32_0 = arith.constant 0 : i32
    %c0_i32_1 = arith.constant 0 : i32
    return %arg0, %arg1, %c0_i32, %c0_i32_0 : i32, i32, i32, i32
  }
}

</mosaic_0001>

<llo_original>
// kernel: tpu_custom_call.1
$region0: #{tpu_custom_call.1}
  #allocation0 [shape = 'u32[]', space=smem, size = 0x4, offset = 0x4, fixed_abs, tag = 'smem constant byte address 0x4 - core index']
  #allocation1 [shape = 'u32[144,128]{1,0:T(1,128)}', space=vmem, size = 0x12000, scoped, tag = 'internal scratch']
  %s0 = inlined_call_operand.vmem [shape: f32[2,12,512], index: 0, kind: input, shape index: {}]
  %s1 = inlined_call_operand.vmem [shape: f32[8,12], index: 1, kind: input, shape index: {}]
  %s2 = inlined_call_operand.vmem [shape: f32[8,1], index: 2, kind: input, shape index: {}]
  %s3 = inlined_call_operand.hbm [shape: f32[2,8,512], index: 3, kind: output, shape index: {0}]
  %s4 = inlined_call_operand.vmem [shape: f32[2,2,8,1], index: 4, kind: output, shape index: {1}]
  %s5 = inlined_call_operand.vmem [shape: f32[2,2,8,1], index: 5, kind: output, shape index: {2}]
  %6 = xla_tuple %s3, %s4, %s5
  %s7 = sld [smem:[#allocation0]]
  $region84: #{tpu_custom_call.1} parent=0
    _
  %s9 = ssub.s32 1, %s7
  %s10 = scalar_select 0, %s9, %s7
  $region1: #{tpu_custom_call.1} parent=0
    #allocation2 [shape = 'u8[32768]{0}', space=vmem, size = 0x8000, scoped, tag = 'input window, operand 0']
    #allocation3 [shape = 'u8[16384]{0}', space=vmem, size = 0x4000, scoped, tag = 'output window, operand 0']
    #allocation4 [shape = 's32[2]{0}', space=sflag, size = 0x8, scoped, tag = 'scoped memory for tpu_custom_call.1']
    %11 = vsyncpa [#allocation4], 0
    %s12 = scalar_lea.sflag [#allocation4], 1
    %13 = vsyncpa %s12, 0
    loop: start=0, step=1, limit=6
    $region2: #{tpu_custom_call.1} parent=1 // loop_pre_header
      _
    $region3: #{tpu_custom_call.1} parent=1 // loop_header
      %s15 = sphi 0, %s19
      %p16 = scmp.ge.s32.totalorder %s15, 6
      %s22 = sphi 0, %s34
      %s23 = sphi 0, %s30
      %s24 = sphi 0, %s22
      %s25 = sphi 0, %s23
      %s26 = sphi 0, %s24
      %s27 = sphi 0, %s25
      %s39 = sphi 0, %s41
      %s42 = sphi 0, %s39
      %s43 = sphi 0, %s42
      %s59 = sphi 0, %s43
      %s63 = sphi 0, %s63
      %s65 = sphi 0, %s63
      %s66 = sphi 0, %s65
      %s80 = sphi 0, %s66
      %s84 = sphi 0, %s84
      %s86 = sphi 0, %s84
      %s87 = sphi 0, %s86
      %s101 = sphi 0, %s87
      %s109 = sphi 0, %s111
      %s112 = sphi 0, %s109
      %s113 = sphi 0, %s112
      %s129 = sphi 0, %s113
      %s137 = sphi 0, %s139
      %s140 = sphi 0, %s137
      %s141 = sphi 0, %s140
      %s157 = sphi 0, %s141
      %s165 = sphi 0, %s167
      %s168 = sphi 0, %s165
      %s169 = sphi 0, %s168
      %s185 = sphi 0, %s169
    $region4: #{tpu_custom_call.1} parent=1 // loop_header_branch
      %18 = sbr.rel (%p16) target = $region8
    $region5: #{tpu_custom_call.1} parent=1 // loop_body
      %s20 = ssub.s32 %s15, 1
      %s21 = ssub.s32 %s15, 2
      %s28 = sadd.s32 1, %s23
      %p29 = scmp.ge.s32.totalorder %s28, 2
      %s30 = scalar_select %p29, 0, %s28
      %s31 = sadd.s32 1, %s22
      %s32 = scalar_select %p29, %s31, %s22
      %p33 = scmp.ge.s32.totalorder %s32, 2
      %s34 = scalar_select %p33, 0, %s32
      %s35 = ssub.s32 %s22, %s34
      %s36 = ssub.s32 %s23, %s30
      %s37 = sor.u32 %s35, %s36
      %p38 = scmp.eq.s32.totalorder %s37, 0
      %s40 = sadd.s32 %s39, 1
      %s41 = scalar_select %p38, %s39, %s40
      %p44 = pneg %p38
      %p45 = scmp.eq.s32.totalorder %s15, 3
      %p46 = por %p44, %p45
      %p47 = scmp.ne.s32.totalorder %s39, %s42
      %p48 = scmp.eq.s32.totalorder %s15, 0
      %p49 = por %p47, %p48
      %p50 = scmp.ne.s32.totalorder %s39, %s42
      %p51 = scmp.eq.s32.totalorder %s20, 3
      %p52 = por %p50, %p51
      %p53 = scmp.ne.s32.totalorder %s42, %s43
      %p54 = scmp.eq.s32.totalorder %s20, 0
      %p55 = por %p53, %p54
      %p56 = scmp.ne.s32.totalorder %s42, %s43
      %p57 = scmp.eq.s32.totalorder %s21, 3
      %p58 = por %p56, %p57
      %p60 = scmp.ne.s32.totalorder %s43, %s59
      %p61 = scmp.eq.s32.totalorder %s21, 0
      %p62 = por %p60, %p61
      %s64 = sadd.s32 %s63, 1
      %p67 = scmp.eq.s32.totalorder %s15, 3
      %p68 = scmp.ne.s32.totalorder %s63, %s65
      %p69 = scmp.eq.s32.totalorder %s15, 0
      %p70 = por %p68, %p69
      %p71 = scmp.ne.s32.totalorder %s63, %s65
      %p72 = scmp.eq.s32.totalorder %s20, 3
      %p73 = por %p71, %p72
      %p74 = scmp.ne.s32.totalorder %s65, %s66
      %p75 = scmp.eq.s32.totalorder %s20, 0
      %p76 = por %p74, %p75
      %p77 = scmp.ne.s32.totalorder %s65, %s66
      %p78 = scmp.eq.s32.totalorder %s21, 3
      %p79 = por %p77, %p78
      %p81 = scmp.ne.s32.totalorder %s66, %s80
      %p82 = scmp.eq.s32.totalorder %s21, 0
      %p83 = por %p81, %p82
      %s85 = sadd.s32 %s84, 1
      %p88 = scmp.eq.s32.totalorder %s15, 3
      %p89 = scmp.ne.s32.totalorder %s84, %s86
      %p90 = scmp.eq.s32.totalorder %s15, 0
      %p91 = por %p89, %p90
      %p92 = scmp.ne.s32.totalorder %s84, %s86
      %p93 = scmp.eq.s32.totalorder %s20, 3
      %p94 = por %p92, %p93
      %p95 = scmp.ne.s32.totalorder %s86, %s87
      %p96 = scmp.eq.s32.totalorder %s20, 0
      %p97 = por %p95, %p96
      %p98 = scmp.ne.s32.totalorder %s86, %s87
      %p99 = scmp.eq.s32.totalorder %s21, 3
      %p100 = por %p98, %p99
      %p102 = scmp.ne.s32.totalorder %s87, %s101
      %p103 = scmp.eq.s32.totalorder %s21, 0
      %p104 = por %p102, %p103
      %s105 = ssub.s32 %s22, %s34
      %s106 = ssub.s32 %s23, %s30
      %s107 = sor.u32 %s105, %s106
      %p108 = scmp.eq.s32.totalorder %s107, 0
      %s110 = sadd.s32 %s109, 1
      %s111 = scalar_select %p108, %s109, %s110
      %p114 = pneg %p108
      %p115 = scmp.eq.s32.totalorder %s15, 3
      %p116 = por %p114, %p115
      %p117 = scmp.ne.s32.totalorder %s109, %s112
      %p118 = scmp.eq.s32.totalorder %s15, 0
      %p119 = por %p117, %p118
      %p120 = scmp.ne.s32.totalorder %s109, %s112
      %p121 = scmp.eq.s32.totalorder %s20, 3
      %p122 = por %p120, %p121
      %p123 = scmp.ne.s32.totalorder %s112, %s113
      %p124 = scmp.eq.s32.totalorder %s20, 0
      %p125 = por %p123, %p124
      %p126 = scmp.ne.s32.totalorder %s112, %s113
      %p127 = scmp.eq.s32.totalorder %s21, 3
      %p128 = por %p126, %p127
      %p130 = scmp.ne.s32.totalorder %s113, %s129
      %p131 = scmp.eq.s32.totalorder %s21, 0
      %p132 = por %p130, %p131
      %s133 = ssub.s32 %s22, %s34
      %s134 = ssub.s32 %s23, %s30
      %s135 = sor.u32 %s133, %s134
      %p136 = scmp.eq.s32.totalorder %s135, 0
      %s138 = sadd.s32 %s137, 1
      %s139 = scalar_select %p136, %s137, %s138
      %p142 = pneg %p136
      %p143 = scmp.eq.s32.totalorder %s15, 3
      %p144 = por %p142, %p143
      %p145 = scmp.ne.s32.totalorder %s137, %s140
      %p146 = scmp.eq.s32.totalorder %s15, 0
      %p147 = por %p145, %p146
      %p148 = scmp.ne.s32.totalorder %s137, %s140
      %p149 = scmp.eq.s32.totalorder %s20, 3
      %p150 = por %p148, %p149
      %p151 = scmp.ne.s32.totalorder %s140, %s141
      %p152 = scmp.eq.s32.totalorder %s20, 0
      %p153 = por %p151, %p152
      %p154 = scmp.ne.s32.totalorder %s140, %s141
      %p155 = scmp.eq.s32.totalorder %s21, 3
      %p156 = por %p154, %p155
      %p158 = scmp.ne.s32.totalorder %s141, %s157
      %p159 = scmp.eq.s32.totalorder %s21, 0
      %p160 = por %p158, %p159
      %s161 = ssub.s32 %s22, %s34
      %s162 = ssub.s32 %s23, %s30
      %s163 = sor.u32 %s161, %s162
      %p164 = scmp.eq.s32.totalorder %s163, 0
      %s166 = sadd.s32 %s165, 1
      %s167 = scalar_select %p164, %s165, %s166
      %p170 = pneg %p164
      %p171 = scmp.eq.s32.totalorder %s15, 3
      %p172 = por %p170, %p171
      %p173 = scmp.ne.s32.totalorder %s165, %s168
      %p174 = scmp.eq.s32.totalorder %s15, 0
      %p175 = por %p173, %p174
      %p176 = scmp.ne.s32.totalorder %s165, %s168
      %p177 = scmp.eq.s32.totalorder %s20, 3
      %p178 = por %p176, %p177
      %p179 = scmp.ne.s32.totalorder %s168, %s169
      %p180 = scmp.eq.s32.totalorder %s20, 0
      %p181 = por %p179, %p180
      %p182 = scmp.ne.s32.totalorder %s168, %s169
      %p183 = scmp.eq.s32.totalorder %s21, 3
      %p184 = por %p182, %p183
      %p186 = scmp.ne.s32.totalorder %s169, %s185
      %p187 = scmp.eq.s32.totalorder %s21, 0
      %p188 = por %p186, %p187
      %p189 = scmp.le.s32.totalorder 1, %s15
      %p190 = scmp.lt.s32.totalorder %s15, 5
      %p191 = pnand %p189, %p190
      %p192 = pneg %p191
      // Predicated region
      $region9: #{tpu_custom_call.1} parent=5 // pred_check
        _
      $region10: #{tpu_custom_call.1} parent=5 // pred_check_branch
        %194 = sbr.rel (%p191) target = $region12
      $region11: #{tpu_custom_call.1} parent=5 // pred_region
        %s195 = ssub.s32 %s15, 1
        // Predicated region
        $region13: #{tpu_custom_call.1} parent=11 // pred_check
          %p196 = pneg %p76
        $region14: #{tpu_custom_call.1} parent=11 // pred_check_branch
          %198 = sbr.rel (%p196) target = $region16
        $region15: #{tpu_custom_call.1} parent=11 // pred_region
          _
        $region16: #{tpu_custom_call.1} parent=11 // pred_fallthru
          _
        // Predicated region
        $region17: #{tpu_custom_call.1} parent=11 // pred_check
          %p199 = pneg %p97
        $region18: #{tpu_custom_call.1} parent=11 // pred_check_branch
          %201 = sbr.rel (%p199) target = $region20
        $region19: #{tpu_custom_call.1} parent=11 // pred_region
          _
        $region20: #{tpu_custom_call.1} parent=11 // pred_fallthru
          _
      $region12: #{tpu_custom_call.1} parent=5 // pred_fallthru
        _
      %p202 = scmp.lt.s32.totalorder %s15, 4
      // Predicated region
      $region21: #{tpu_custom_call.1} parent=5 // pred_check
        %p203 = pneg %p202
      $region22: #{tpu_custom_call.1} parent=5 // pred_check_branch
        %205 = sbr.rel (%p203) target = $region24
      $region23: #{tpu_custom_call.1} parent=5 // pred_region
        // Predicated region
        $region25: #{tpu_custom_call.1} parent=23 // pred_check
          %p206 = pneg %p49
        $region26: #{tpu_custom_call.1} parent=23 // pred_check_branch
          %208 = sbr.rel (%p206) target = $region28
        $region27: #{tpu_custom_call.1} parent=23 // pred_region
          %s209 = sand.u32 %s39, 1
          %s210 = sand.u32 %s39, 1
          %s211 = smul.addr %s210, 32
          %s212 = scalar_lea.vmem [#allocation2], %s211
          %s213 = smul.u32 2, %s23
          %s214 = smul.addr %s22, 8
          %s215 = sadd.s32 %s213, %s214
          %s216 = smul.addr %s215, 8
          %s217 = scalar_lea.vmem %s0, %s216
          // Predicated region
          $region29: #{tpu_custom_call.1} parent=27 // pred_check
            _
          $region30: #{tpu_custom_call.1} parent=27 // pred_check_branch
            %219 = sbr.rel (0) target = $region32
          $region31: #{tpu_custom_call.1} parent=27 // pred_region
            // Predicated region
            $region33: #{tpu_custom_call.1} parent=31 // pred_check
              _
            $region34: #{tpu_custom_call.1} parent=31 // pred_check_branch
              %221 = sbr.rel (0) target = $region36
            $region35: #{tpu_custom_call.1} parent=31 // pred_region
              loop: start=0, step=1, limit=1
              $region37: #{tpu_custom_call.1} parent=35 // loop_pre_header
                _
              $region38: #{tpu_custom_call.1} parent=35 // loop_header
                %s223 = sphi 0, %s227
                %p224 = scmp.ge.s32.totalorder %s223, 1
                %s228 = sphi %s217, %s217
                %s229 = sphi %s212, %s212
              $region39: #{tpu_custom_call.1} parent=35 // loop_header_branch
                %226 = sbr.rel (%p224) target = $region43
              $region40: #{tpu_custom_call.1} parent=35 // loop_body
                %v230 = vld [vmem:[%s228] sm:$0xff]
                %231 = vst [vmem:[%s229] sm:$0xff] %v230
                %v232 = vld [vmem:[%s228 + $0x8] sm:$0xff]
                %233 = vst [vmem:[%s229 + $0x8] sm:$0xff] %v232
                %v234 = vld [vmem:[%s228 + $0x20] sm:$0xff]
                %235 = vst [vmem:[%s229 + $0x10] sm:$0xff] %v234
                %v236 = vld [vmem:[%s228 + $0x28] sm:$0xff]
                %237 = vst [vmem:[%s229 + $0x18] sm:$0xff] %v236
              $region41: #{tpu_custom_call.1} parent=35 // loop_footer
                %s227 = sadd.s32 1, %s223
              $region42: #{tpu_custom_call.1} parent=35 // loop_footer_branch
                %222 = sbr.rel target = $region38
              $region43: #{tpu_custom_call.1} parent=35 // loop_exit
                _
            $region36: #{tpu_custom_call.1} parent=31 // pred_fallthru
              _
            // Predicated region
            $region44: #{tpu_custom_call.1} parent=31 // pred_check
              _
            $region45: #{tpu_custom_call.1} parent=31 // pred_check_branch
              %239 = sbr.rel target = $region47
            $region46: #{tpu_custom_call.1} parent=31 // pred_region
              _
            $region47: #{tpu_custom_call.1} parent=31 // pred_fallthru
              _
          $region32: #{tpu_custom_call.1} parent=27 // pred_fallthru
            _
          %240 = vnop
        $region28: #{tpu_custom_call.1} parent=23 // pred_fallthru
          _
      $region24: #{tpu_custom_call.1} parent=5 // pred_fallthru
        _
      %p241 = scmp.le.s32.totalorder 1, %s15
      %p242 = scmp.lt.s32.totalorder %s15, 5
      %p243 = pnand %p241, %p242
      %p244 = pneg %p243
      // Predicated region
      $region48: #{tpu_custom_call.1} parent=5 // pred_check
        _
      $region49: #{tpu_custom_call.1} parent=5 // pred_check_branch
        %246 = sbr.rel (%p243) target = $region51
      $region50: #{tpu_custom_call.1} parent=5 // pred_region
        %s247 = ssub.s32 %s15, 1
        %s248 = sand.u32 %s42, 1
        %s249 = sand.u32 %s42, 1
        %s250 = smul.addr %s249, 32
        %s251 = scalar_lea.vmem [#allocation2], %s250
        // Predicated region
        $region52: #{tpu_custom_call.1} parent=50 // pred_check
          %p252 = pneg %p55
        $region53: #{tpu_custom_call.1} parent=50 // pred_check_branch
          %254 = sbr.rel (%p252) target = $region55
        $region54: #{tpu_custom_call.1} parent=50 // pred_region
          _
        $region55: #{tpu_custom_call.1} parent=50 // pred_fallthru
          _
        %s255 = sand.u32 %s42, 1
        %s256 = sand.u32 %s42, 1
        %s257 = smul.addr %s256, 32
        %s258 = scalar_lea.vmem [#allocation2], %s257
        %p259 = pneg %p55
        %p260 = pneg %p52
        %p261 = pneg %p76
        %p262 = pneg %p73
        %p263 = pneg %p97
        %p264 = pneg %p94
        %p265 = pneg %p125
        %p266 = pneg %p122
        %s267 = sand.u32 %s112, 1
        %s268 = scalar_lea.sflag [#allocation4], %s267
        %s269 = sand.u32 %s112, 1
        %s270 = smul.addr %s269, 16
        %s271 = scalar_lea.vmem [#allocation3], %s270
        %p272 = pneg %p153
        %p273 = pneg %p150
        %p274 = scmp.lt.s32.totalorder %s24, 1
        %s275 = scalar_select %p274, %s24, 1
        %p276 = scmp.lt.s32.totalorder %s25, 1
        %s277 = scalar_select %p276, %s25, 1
        %s278 = smul.addr %s275, 2
        %s279 = sadd.s32 %s277, %s278
        %s280 = smul.addr %s279, 8
        %s281 = scalar_lea.vmem %s4, %s280
        %p282 = pneg %p181
        %p283 = pneg %p178
        %p284 = scmp.lt.s32.totalorder %s24, 1
        %s285 = scalar_select %p284, %s24, 1
        %p286 = scmp.lt.s32.totalorder %s25, 1
        %s287 = scalar_select %p286, %s25, 1
        %s288 = smul.addr %s285, 2
        %s289 = sadd.s32 %s287, %s288
        %s290 = smul.addr %s289, 8
        %s291 = scalar_lea.vmem %s5, %s290
        %s292 = smul.u32 2, %s25
        %s293 = smul.u32 2, %s25
        %p294 = scmp.lt.s32.totalorder %s24, 1
        %s295 = scalar_select %p294, %s24, 1
        %p296 = scmp.lt.s32.totalorder %s25, 1
        %s297 = scalar_select %p296, %s25, 1
        %s298 = smul.addr %s295, 2
        %s299 = sadd.s32 %s297, %s298
        %s300 = smul.addr %s299, 8
        %s301 = scalar_lea.vmem %s4, %s300
        %p302 = scmp.lt.s32.totalorder %s24, 1
        %s303 = scalar_select %p302, %s24, 1
        %p304 = scmp.lt.s32.totalorder %s25, 1
        %s305 = scalar_select %p304, %s25, 1
        %s306 = smul.addr %s303, 2
        %s307 = sadd.s32 %s305, %s306
        %s308 = smul.addr %s307, 8
        %s309 = scalar_lea.vmem %s5, %s308
        %v310 = vld [vmem:[%s251] sm:$0xff]
        %v311 = vld [vmem:[%s251 + $0x8] sm:$0xff]
        %v312 = vld [vmem:[%s251 + $0x10] sm:$0xf]
        %v313 = vld [vmem:[%s251 + $0x18] sm:$0xf]
        %v314 = vld [vmem:[%s1] sm:$0xff]
        %v315 = vld [vmem:[%s2] sm:$0xff]
        %317 = vset.pattern.permute.xlu0 0
        %318 = vperm.xlu0 %317, %v315
        %v319 = vpop.permute.xlu0 %318
        %vm321 = vcmask 97280
        %v323 = vsel %vm321, %v314, 0
        %vm325 = vcmask 1043456
        %v327 = vsel %vm325, %v312, 0
        %v330 = vsel %vm325, %v313, 0
        %332 = vmatprep.subr.mxu0 0.0
        %333 = vmatpush1.msra.mxu0 0.0
        %334 = vmatprep.subr.mxu0 0.0
        %335 = vmatpush1.msra.mxu0 0.0
        %336 = vmatprep.subr.mxu0 0.0
        %337 = vmatpush1.msra.mxu0 0.0
        %338 = vmatprep.subr.mxu0 0.0
        %339 = vmatpush1.msra.mxu0 0.0
        %340 = vmatprep.subr.mxu0 0.0
        %341 = vmatpush1.msra.mxu0 0.0
        %342 = vmatprep.subr.mxu0 0.0
        %343 = vmatpush1.msra.mxu0 0.0
        %344 = vmatprep.subr.mxu0 0.0
        %345 = vmatpush1.msra.mxu0 0.0
        %346 = vmatprep.subr.mxu0 0.0
        %347 = vmatpush1.msra.mxu0 0.0
        %348 = vmatprep.subr.mxu0 0.0
        %349 = vmatpush1.msra.mxu0 0.0
        %350 = vmatprep.subr.mxu0 0.0
        %351 = vmatpush1.msra.mxu0 0.0
        %352 = vmatprep.subr.mxu0 0.0
        %353 = vmatpush1.msra.mxu0 0.0
        %354 = vmatprep.subr.mxu0 0.0
        %355 = vmatpush1.msra.mxu0 0.0
        %356 = vmatprep.subr.mxu0 0.0
        %357 = vmatpush1.msra.mxu0 0.0
        %358 = vmatprep.subr.mxu0 0.0
        %359 = vmatpush1.msra.mxu0 0.0
        %360 = vmatprep.subr.mxu0 %v330
        %361 = vmatpush1.msra.mxu0 %v327
        %362 = vmatprep.subr.mxu0 %v311
        %363 = vmatpush1.msra.mxu0 %v310
        %364 = vmatprep.subr.mxu0 0.0
        %365 = vmatpush2.msra.mxu0 0.0
        %366 = vmatprep.subr.mxu0 0.0
        %367 = vmatpush2.msra.mxu0 0.0
        %368 = vmatprep.subr.mxu0 0.0
        %369 = vmatpush2.msra.mxu0 0.0
        %370 = vmatprep.subr.mxu0 0.0
        %371 = vmatpush2.msra.mxu0 0.0
        %372 = vmatprep.subr.mxu0 0.0
        %373 = vmatpush2.msra.mxu0 0.0
        %374 = vmatprep.subr.mxu0 0.0
        %375 = vmatpush2.msra.mxu0 0.0
        %376 = vmatprep.subr.mxu0 0.0
        %377 = vmatpush2.msra.mxu0 0.0
        %378 = vmatprep.subr.mxu0 0.0
        %379 = vmatpush2.msra.mxu0 0.0
        %380 = vmatprep.subr.mxu0 0.0
        %381 = vmatpush2.msra.mxu0 0.0
        %382 = vmatprep.subr.mxu0 0.0
        %383 = vmatpush2.msra.mxu0 0.0
        %384 = vmatprep.subr.mxu0 0.0
        %385 = vmatpush2.msra.mxu0 0.0
        %386 = vmatprep.subr.mxu0 0.0
        %387 = vmatpush2.msra.mxu0 0.0
        %388 = vmatprep.subr.mxu0 0.0
        %389 = vmatpush2.msra.mxu0 0.0
        %390 = vmatprep.subr.mxu0 0.0
        %391 = vmatpush2.msra.mxu0 0.0
        %392 = vmatprep.subr.mxu0 0.0
        %393 = vmatpush2.msra.mxu0 0.0
        %394 = vmatprep.subr.mxu0 0.0
        %395 = vmatpush2.msra.mxu0 0.0
        %396 = vmatprep.mubr.f32.mxu0 0.0
        %397 = vmatmul.mubr.f32.gmra.mxu0 %v323
        %v398 = vpop.f32.mrf.mxu0
        %v399 = vadd.f32 %v319, %v398
        %v400 = vpop.f32.mrf.mxu0
        %v401 = vadd.f32 %v319, %v400
        %402 = vdwg.mxu0
        %403 = vst [vmem:[%s271] sm:$0xff] %v399
        %404 = vst [vmem:[%s271 + $0x8] sm:$0xff] %v401
        %v405 = vadd.f32 %v399, %v401
        %406 = vadd.xlane.f32.xlu0 %v405
        %v407 = vpop.xlane.xlu0 %406
        %vm408 = vcmask 7168
        %409 = vst.msk [vmem:[%s301] sm:$0xff] %vm408, %v407
        %v410 = vmul.f32 %v399, %v399
        %v411 = vmul.f32 %v401, %v401
        %v412 = vadd.f32 %v410, %v411
        %413 = vadd.xlane.f32.xlu0 %v412
        %v414 = vpop.xlane.xlu0 %413
        %415 = vst.msk [vmem:[%s309] sm:$0xff] %vm408, %v414
        %s416 = sand.u32 %s112, 1
        %s417 = scalar_lea.sflag [#allocation4], %s416
        %s418 = sand.u32 %s112, 1
        %s419 = smul.addr %s418, 16
        %s420 = scalar_lea.vmem [#allocation3], %s419
        %p421 = scmp.lt.s32.totalorder %s24, 1
        %s422 = scalar_select %p421, %s24, 1
        %p423 = scmp.lt.s32.totalorder %s25, 1
        %s424 = scalar_select %p423, %s25, 1
        %s425 = smul.addr %s422, 2
        %s426 = sadd.s32 %s424, %s425
        %s427 = smul.addr %s426, 8
        %s428 = scalar_lea.vmem %s4, %s427
        %p429 = scmp.lt.s32.totalorder %s24, 1
        %s430 = scalar_select %p429, %s24, 1
        %p431 = scmp.lt.s32.totalorder %s25, 1
        %s432 = scalar_select %p431, %s25, 1
        %s433 = smul.addr %s430, 2
        %s434 = sadd.s32 %s432, %s433
        %s435 = smul.addr %s434, 8
        %s436 = scalar_lea.vmem %s5, %s435
        // Predicated region
        $region56: #{tpu_custom_call.1} parent=50 // pred_check
          %p437 = pneg %p122
        $region57: #{tpu_custom_call.1} parent=50 // pred_check_branch
          %439 = sbr.rel (%p437) target = $region59
        $region58: #{tpu_custom_call.1} parent=50 // pred_region
          %s440 = smul.u32 2, %s25
          %s442 = ssub.s32 256, 256
          %443 = vsyncadd %s417, %s442
          %s444 = smul.addr %s24, 4
          %s445 = sadd.s32 %s440, %s444
          %s446 = smul.addr %s445, 128
          %s447 = scalar_lea.hbm %s3, %s446
          %s449 = sshll.u32 %s420, 4
          %s450 = int_to_ptr.vmem [resolvable:$true] %s449
          %452 = dma.vmem_to_hbm [thread:$0]  %s450, 256, %s447, %s417
        $region59: #{tpu_custom_call.1} parent=50 // pred_fallthru
          _
        // Predicated region
        $region60: #{tpu_custom_call.1} parent=50 // pred_check
          %p453 = pneg %p150
        $region61: #{tpu_custom_call.1} parent=50 // pred_check_branch
          %455 = sbr.rel (%p453) target = $region63
        $region62: #{tpu_custom_call.1} parent=50 // pred_region
          _
        $region63: #{tpu_custom_call.1} parent=50 // pred_fallthru
          _
        // Predicated region
        $region64: #{tpu_custom_call.1} parent=50 // pred_check
          %p456 = pneg %p178
        $region65: #{tpu_custom_call.1} parent=50 // pred_check_branch
          %458 = sbr.rel (%p456) target = $region67
        $region66: #{tpu_custom_call.1} parent=50 // pred_region
          _
        $region67: #{tpu_custom_call.1} parent=50 // pred_fallthru
          _
      $region51: #{tpu_custom_call.1} parent=5 // pred_fallthru
        _
      %p459 = scmp.le.s32.totalorder 2, %s15
      // Predicated region
      $region68: #{tpu_custom_call.1} parent=5 // pred_check
        %p460 = pneg %p459
      $region69: #{tpu_custom_call.1} parent=5 // pred_check_branch
        %462 = sbr.rel (%p460) target = $region71
      $region70: #{tpu_custom_call.1} parent=5 // pred_region
        %s463 = ssub.s32 %s15, 2
        // Predicated region
        $region72: #{tpu_custom_call.1} parent=70 // pred_check
          %p464 = pneg %p128
        $region73: #{tpu_custom_call.1} parent=70 // pred_check_branch
          %466 = sbr.rel (%p464) target = $region75
        $region74: #{tpu_custom_call.1} parent=70 // pred_region
          %s467 = sand.u32 %s113, 1
          %s468 = scalar_lea.sflag [#allocation4], %s467
          %s469 = sand.u32 %s113, 1
          %s470 = smul.addr %s469, 16
          %s471 = scalar_lea.vmem [#allocation3], %s470
          %472 = dma.done %s468, 256
        $region75: #{tpu_custom_call.1} parent=70 // pred_fallthru
          _
        // Predicated region
        $region76: #{tpu_custom_call.1} parent=70 // pred_check
          %p473 = pneg %p156
        $region77: #{tpu_custom_call.1} parent=70 // pred_check_branch
          %475 = sbr.rel (%p473) target = $region79
        $region78: #{tpu_custom_call.1} parent=70 // pred_region
          %p476 = scmp.lt.s32.totalorder %s26, 1
          %s477 = scalar_select %p476, %s26, 1
          %p478 = scmp.lt.s32.totalorder %s27, 1
          %s479 = scalar_select %p478, %s27, 1
          %s480 = smul.addr %s477, 2
          %s481 = sadd.s32 %s479, %s480
          %s482 = smul.addr %s481, 8
          %s483 = scalar_lea.vmem %s4, %s482
        $region79: #{tpu_custom_call.1} parent=70 // pred_fallthru
          _
        // Predicated region
        $region80: #{tpu_custom_call.1} parent=70 // pred_check
          %p484 = pneg %p184
        $region81: #{tpu_custom_call.1} parent=70 // pred_check_branch
          %486 = sbr.rel (%p484) target = $region83
        $region82: #{tpu_custom_call.1} parent=70 // pred_region
          %p487 = scmp.lt.s32.totalorder %s26, 1
          %s488 = scalar_select %p487, %s26, 1
          %p489 = scmp.lt.s32.totalorder %s27, 1
          %s490 = scalar_select %p489, %s27, 1
          %s491 = smul.addr %s488, 2
          %s492 = sadd.s32 %s490, %s491
          %s493 = smul.addr %s492, 8
          %s494 = scalar_lea.vmem %s5, %s493
        $region83: #{tpu_custom_call.1} parent=70 // pred_fallthru
          _
      $region71: #{tpu_custom_call.1} parent=5 // pred_fallthru
        _
    $region6: #{tpu_custom_call.1} parent=1 // loop_footer
      %s19 = sadd.s32 1, %s15
    $region7: #{tpu_custom_call.1} parent=1 // loop_footer_branch
      %14 = sbr.rel target = $region3
    $region8: #{tpu_custom_call.1} parent=1 // loop_exit
      _
    %495 = vsyncpa [#allocation4], 1
    %s496 = scalar_lea.sflag [#allocation4], 1
    %497 = vsyncpa %s496, 1

</llo_original>
